<compile_context>
chip_gen: v6e
topology: v6e:2x2x1
jax: 0.10.0
libtpu: 0.0.40
codegen_flags: <defaults>
</compile_context>

<pallas_src>
import functools

import jax
import jax.numpy as jnp
from jax.experimental import pallas as pl
from jax.experimental.pallas import tpu as pltpu


def gmsnet_stream_kernel(x_ref, w_mlp_ref, b_mlp_ref, part_ref, acc_ref, *, rem):
    # x_ref     : (B, tile_n, Din) f32   -- streamed / double-buffered
    # w_mlp_ref : (Din, F) f32, b_mlp_ref: (1, F) f32  -- VMEM-resident
    # part_ref  : (1, B, F) f32          -- per-chunk partial sum, written once
    # acc_ref   : (B, F) f32 scratch     -- running sum over this chunk's tiles
    # rem       : static int, valid rows in the global-last tile (0 => aligned)
    t = pl.program_id(1)
    t_last = pl.num_programs(1) - 1

    @pl.when(t == 0)
    def _init():
        acc_ref[...] = jnp.zeros_like(acc_ref)

    b, tn, din = x_ref.shape
    # Conv1d(kernel_size=1) == per-point matmul: flatten (B, tn) rows so the
    # MXU sees one large-M 2-D matmul instead of many tiny batched ones.
    x2d = x_ref[...].reshape(b * tn, din)
    h = jnp.dot(x2d, w_mlp_ref[...], preferred_element_type=jnp.float32)
    h = jnp.maximum(h + b_mlp_ref[...], 0.0)                      # bias + ReLU
    h = h.reshape(b, tn, -1)                                      # (B, tn, F)

    if rem:
        # Only the global-last tile is ragged (contains unspecified pad rows
        # because x is NOT padded in HBM).  Keep the select-based mask off the
        # steady-state path: it runs on exactly one grid step.
        c = pl.program_id(0)
        is_global_last = jnp.logical_and(c == pl.num_programs(0) - 1, t == t_last)

        @pl.when(jnp.logical_not(is_global_last))
        def _steady():
            acc_ref[...] += jnp.sum(h, axis=1)

        @pl.when(is_global_last)
        def _tail():
            rows = jax.lax.broadcasted_iota(jnp.int32, (1, tn, 1), 1)
            acc_ref[...] += jnp.sum(jnp.where(rows < rem, h, 0.0), axis=1)
    else:
        acc_ref[...] += jnp.sum(h, axis=1)

    @pl.when(t == t_last)
    def _writeout():
        part_ref[0, :, :] = acc_ref[...]


def gmsnet_head_kernel(part_ref, w1_ref, b1_ref, w2_ref, b2_ref, o_ref, *, inv_n):
    # part_ref: (n_chunks, B, F) partial sums; everything here is tiny.
    g = jnp.sum(part_ref[...], axis=0) * inv_n                    # mean over N
    z = jnp.dot(g, w1_ref[...], preferred_element_type=jnp.float32)
    z = jnp.maximum(z + b1_ref[...], 0.0)                         # fc1 + ReLU
    y = jnp.dot(z, w2_ref[...], preferred_element_type=jnp.float32) + b2_ref[...]
    o_ref[...] = 0.1 * jnp.tanh(y)                                # fc2, 0.1*tanh


def gmsnet_forward(x, w_mlp, b_mlp, w1, b1, w2, b2, *,
                   tile_n=2048, vmem_budget_bytes=12 << 20):
    """GMSNet forward.  x: (B, N, input_dim) f32 -> (B, input_dim) f32."""
    B, N, Din = x.shape
    F = w_mlp.shape[1]

    # Lane-padded VMEM footprint of the streamed x block: Din pads to 128 lanes,
    # double-buffered by the pipeline.  Budget keeps us under the smallest
    # scoped-VMEM default (16 MiB on v5e) and well under v7x's 64 MiB physical.
    din_padded = max(128, pl.cdiv(Din, 128) * 128)
    bytes_per_tile_row = 2 * B * din_padded * 4          # double buffer, f32
    max_rows_vmem = max(8, (vmem_budget_bytes // bytes_per_tile_row) // 8 * 8)

    # Second-to-last block dim must be a multiple of 8 (f32 sublane) and never
    # larger than the (rounded-up) point count.
    tile_n = max(8, min(int(tile_n), max_rows_vmem, pl.cdiv(N, 8) * 8))
    tile_n -= tile_n % 8

    num_tiles = pl.cdiv(N, tile_n)
    # Split the N-reduction into 2 chunks when possible so both v7x TCs get
    # work (and DMA streams); neutral on single-TC v5e/v6e.
    n_chunks = 2 if (num_tiles >= 2 and num_tiles % 2 == 0) else 1
    tiles_per_chunk = num_tiles // n_chunks
    rem = N % tile_n                                     # ragged tail rows

    stream_kernel = functools.partial(gmsnet_stream_kernel, rem=rem)

    partial = pl.pallas_call(
        stream_kernel,
        out_shape=jax.ShapeDtypeStruct((n_chunks, B, F), jnp.float32),
        grid_spec=pltpu.PrefetchScalarGridSpec(
            num_scalar_prefetch=0,
            grid=(n_chunks, tiles_per_chunk),
            in_specs=[
                # x stream: chunk c covers tiles [c*tiles_per_chunk, ...)
                pl.BlockSpec((B, tile_n, Din),
                             lambda c, t: (0, c * tiles_per_chunk + t, 0)),
                pl.BlockSpec((Din, F), lambda c, t: (0, 0)),     # w_mlp
                pl.BlockSpec((1, F), lambda c, t: (0, 0)),       # b_mlp
            ],
            out_specs=pl.BlockSpec((1, B, F), lambda c, t: (c, 0, 0)),
            scratch_shapes=[pltpu.VMEM((B, F), jnp.float32)],
        ),
        compiler_params=pltpu.CompilerParams(
            # chunk axis is independent (megacore-shardable); tile axis is the
            # sequential reduction into the accumulator.
            dimension_semantics=("parallel", "arbitrary"),
        ),
        cost_estimate=pl.CostEstimate(
            flops=2 * B * N * Din * F,
            transcendentals=0,
            bytes_accessed=(x.size * x.dtype.itemsize
                            + w_mlp.size * 4 + n_chunks * B * F * 4),
        ),
    )(x, w_mlp, b_mlp)

    # Tiny head: mean over N + fc1/ReLU/fc2/0.1*tanh as a trivial second kernel
    # (all operands fit in VMEM as whole-array blocks).
    head_kernel = functools.partial(gmsnet_head_kernel, inv_n=1.0 / N)
    return pl.pallas_call(
        head_kernel,
        out_shape=jax.ShapeDtypeStruct((B, Din), jnp.float32),
    )(partial, w1, b1, w2, b2)


def init_params(key, input_dim, feature_dim, hidden_channels):
    """Deterministic kaiming-normal (fan_in, relu) init; biases zero."""
    k_mlp, k_fc1, k_fc2 = jax.random.split(key, 3)

    def kaiming(k, fan_in, shape):
        std = (2.0 / fan_in) ** 0.5
        return std * jax.random.normal(k, shape, dtype=jnp.float32)

    # Conv1d(input_dim, feature_dim, k=1): torch weight (F, Din, 1) -> kernel (Din, F).
    w_mlp = kaiming(k_mlp, input_dim, (feature_dim, input_dim)).T
    b_mlp = jnp.zeros((1, feature_dim), jnp.float32)
    # Linear(feature_dim, hidden): torch weight (H, F) -> kernel uses (F, H).
    w1 = kaiming(k_fc1, feature_dim, (hidden_channels, feature_dim)).T
    b1 = jnp.zeros((1, hidden_channels), jnp.float32)
    # Linear(hidden, input_dim): torch weight (Din, H) -> kernel uses (H, Din).
    w2 = kaiming(k_fc2, hidden_channels, (input_dim, hidden_channels)).T
    b2 = jnp.zeros((1, input_dim), jnp.float32)
    return w_mlp, b_mlp, w1, b1, w2, b2


def reference_forward(x, w_mlp, b_mlp, w1, b1, w2, b2):
    h = jnp.maximum(jnp.einsum("bnd,df->bnf", x, w_mlp) + b_mlp, 0.0)
    g = jnp.mean(h, axis=1)
    z = jnp.maximum(g @ w1 + b1, 0.0)
    return 0.1 * jnp.tanh(z @ w2 + b2)


if __name__ == "__main__":
    B, N = 2, 24               # batch, number of points (not a tile multiple on purpose)
    INPUT_DIM = 8
    FEATURE_DIM = 32
    HIDDEN = 32

    key = jax.random.PRNGKey(0)
    kx, kp = jax.random.split(key)
    x = jax.random.normal(kx, (B, N, INPUT_DIM), dtype=jnp.float32)
    params = init_params(kp, INPUT_DIM, FEATURE_DIM, HIDDEN)

    ref = reference_forward(x, *params)

    # Config 1: tile_n=16 -> 2 tiles, 2 parallel chunks, ragged last tile:
    # exercises accumulator init, the tail-only mask, and per-chunk writeout.
    out_small = jax.block_until_ready(gmsnet_forward(x, *params, tile_n=16))
    # Config 2: default (large) tile_n -> single tile / single chunk, no mask.
    out_big = jax.block_until_ready(gmsnet_forward(x, *params))

    assert out_small.shape == (B, INPUT_DIM)
    assert out_big.shape == (B, INPUT_DIM)
    # All-f32 path: only matmul accumulation-order / precision-mode slack.
    assert jnp.allclose(out_small, ref, atol=2e-4, rtol=1e-3), "mismatch (tiled) vs reference"
    assert jnp.allclose(out_big, ref, atol=2e-4, rtol=1e-3), "mismatch (single tile) vs reference"

    print("KERNEL_OK")
</pallas_src>

<mosaic_0001>
module attributes {stable_mosaic.version = 11 : i64} {
  func.func @gmsnet_stream_kernel(%arg0: i32, %arg1: i32, %arg2: memref<2x16x8xf32, #tpu.memory_space<vmem>>, %arg3: memref<8x32xf32, #tpu.memory_space<vmem>>, %arg4: memref<1x32xf32, #tpu.memory_space<vmem>>, %arg5: memref<1x2x32xf32, #tpu.memory_space<vmem>>, %arg6: memref<2x32xf32, #tpu.memory_space<vmem>>) attributes {dimension_semantics = [#tpu.dimension_semantics<parallel>, #tpu.dimension_semantics<arbitrary>], iteration_bounds = array<i64: 2, 1>, scalar_prefetch = 0 : i64, scratch_operands = 1 : i64, tpu.core_type = #tpu.core_type<tc>, window_params = [{transform_indices = @transform_0, window_bounds = array<i64: 2, 16, 8>}, {pipeline_mode = #tpu.pipeline_mode<synchronous>, transform_indices = @transform_1, window_bounds = array<i64: 8, 32>}, {pipeline_mode = #tpu.pipeline_mode<synchronous>, transform_indices = @transform_2, window_bounds = array<i64: 1, 32>}, {transform_indices = @transform_3, window_bounds = array<i64: 1, 2, 32>}]} {
    %c0_i32 = arith.constant 0 : i32
    %0 = arith.cmpi eq, %arg1, %c0_i32 : i32
    %1 = arith.extui %0 : i1 to i32
    %c0_i32_0 = arith.constant 0 : i32
    %2 = arith.cmpi ne, %1, %c0_i32_0 : i32
    scf.if %2 {
      %cst_13 = arith.constant 0.000000e+00 : f32
      %24 = vector.broadcast %cst_13 : f32 to vector<2x32xf32>
      %c0_14 = arith.constant 0 : index
      %c0_15 = arith.constant 0 : index
      %25 = vector.load %arg6[%c0_14, %c0_15] : memref<2x32xf32, #tpu.memory_space<vmem>>, vector<2x32xf32>
      tpu.vector_store %arg6[%c0_14, %c0_15], %24 {strides = array<i32>} : memref<2x32xf32, #tpu.memory_space<vmem>>, vector<2x32xf32>,
    } else {
    }
    %c0 = arith.constant 0 : index
    %c0_1 = arith.constant 0 : index
    %c0_2 = arith.constant 0 : index
    %3 = vector.load %arg2[%c0, %c0_1, %c0_2] : memref<2x16x8xf32, #tpu.memory_space<vmem>>, vector<2x16x8xf32>
    %4 = vector.shape_cast %3 : vector<2x16x8xf32> to vector<32x8xf32>
    %c0_3 = arith.constant 0 : index
    %c0_4 = arith.constant 0 : index
    %5 = vector.load %arg3[%c0_3, %c0_4] : memref<8x32xf32, #tpu.memory_space<vmem>>, vector<8x32xf32>
    %cst = arith.constant dense<0.000000e+00> : vector<32x32xf32>
    %6 = tpu.matmul %4, %5, %cst {dimension_numbers = #tpu.dot_dimension_numbers<[1], [0], [0], [1], [0, 0, 1, 1], [], []>} : vector<32x8xf32>, vector<8x32xf32>, vector<32x32xf32> -> vector<32x32xf32>
    %c0_5 = arith.constant 0 : index
    %c0_6 = arith.constant 0 : index
    %7 = vector.load %arg4[%c0_5, %c0_6] : memref<1x32xf32, #tpu.memory_space<vmem>>, vector<1x32xf32>
    %8 = vector.broadcast %7 : vector<1x32xf32> to vector<32x32xf32>
    %9 = arith.addf %6, %8 : vector<32x32xf32>
    %cst_7 = arith.constant 0.000000e+00 : f32
    %10 = vector.broadcast %cst_7 : f32 to vector<32x32xf32>
    %11 = arith.maximumf %9, %10 : vector<32x32xf32>
    %12 = vector.shape_cast %11 : vector<32x32xf32> to vector<2x16x32xf32>
    %c1_i32 = arith.constant 1 : i32
    %13 = arith.cmpi eq, %arg0, %c1_i32 : i32
    %c0_i32_8 = arith.constant 0 : i32
    %14 = arith.cmpi eq, %arg1, %c0_i32_8 : i32
    %15 = arith.andi %13, %14 : i1
    %true = arith.constant true
    %16 = arith.xori %15, %true : i1
    %17 = arith.extui %16 : i1 to i32
    %c0_i32_9 = arith.constant 0 : i32
    %18 = arith.cmpi ne, %17, %c0_i32_9 : i32
    scf.if %18 {
      %c0_13 = arith.constant 0 : index
      %c0_14 = arith.constant 0 : index
      %24 = vector.load %arg6[%c0_13, %c0_14] : memref<2x32xf32, #tpu.memory_space<vmem>>, vector<2x32xf32>
      %cst_15 = arith.constant dense<0.000000e+00> : vector<2x32xf32>
      %25 = vector.multi_reduction <add>, %12, %cst_15 [1] : vector<2x16x32xf32> to vector<2x32xf32>
      %26 = arith.addf %24, %25 : vector<2x32xf32>
      %c0_16 = arith.constant 0 : index
      %c0_17 = arith.constant 0 : index
      %27 = vector.load %arg6[%c0_16, %c0_17] : memref<2x32xf32, #tpu.memory_space<vmem>>, vector<2x32xf32>
      tpu.vector_store %arg6[%c0_16, %c0_17], %26 {strides = array<i32>} : memref<2x32xf32, #tpu.memory_space<vmem>>, vector<2x32xf32>,
    } else {
    }
    %19 = arith.extui %15 : i1 to i32
    %c0_i32_10 = arith.constant 0 : i32
    %20 = arith.cmpi ne, %19, %c0_i32_10 : i32
    scf.if %20 {
      %24 = tpu.iota {dimensions = array<i32: 1>} : vector<1x16x1xi32>
      %c0_13 = arith.constant 0 : index
      %c0_14 = arith.constant 0 : index
      %25 = vector.load %arg6[%c0_13, %c0_14] : memref<2x32xf32, #tpu.memory_space<vmem>>, vector<2x32xf32>
      %c8_i32 = arith.constant 8 : i32
      %26 = vector.broadcast %c8_i32 : i32 to vector<1x16x1xi32>
      %27 = arith.cmpi slt, %24, %26 : vector<1x16x1xi32>
      %cst_15 = arith.constant 0.000000e+00 : f32
      %28 = vector.shape_cast %27 : vector<1x16x1xi1> to vector<1x16x1xi1>
      %29 = vector.broadcast %28 : vector<1x16x1xi1> to vector<2x16x32xi1>
      %30 = vector.broadcast %cst_15 : f32 to vector<2x16x32xf32>
      %31 = arith.select %29, %12, %30 : vector<2x16x32xi1>, vector<2x16x32xf32>
      %cst_16 = arith.constant dense<0.000000e+00> : vector<2x32xf32>
      %32 = vector.multi_reduction <add>, %31, %cst_16 [1] : vector<2x16x32xf32> to vector<2x32xf32>
      %33 = arith.addf %25, %32 : vector<2x32xf32>
      %c0_17 = arith.constant 0 : index
      %c0_18 = arith.constant 0 : index
      %34 = vector.load %arg6[%c0_17, %c0_18] : memref<2x32xf32, #tpu.memory_space<vmem>>, vector<2x32xf32>
      tpu.vector_store %arg6[%c0_17, %c0_18], %33 {strides = array<i32>} : memref<2x32xf32, #tpu.memory_space<vmem>>, vector<2x32xf32>,
    } else {
    }
    %c0_i32_11 = arith.constant 0 : i32
    %21 = arith.cmpi eq, %arg1, %c0_i32_11 : i32
    %22 = arith.extui %21 : i1 to i32
    %c0_i32_12 = arith.constant 0 : i32
    %23 = arith.cmpi ne, %22, %c0_i32_12 : i32
    scf.if %23 {
      %c0_13 = arith.constant 0 : index
      %c0_14 = arith.constant 0 : index
      %24 = vector.load %arg6[%c0_13, %c0_14] : memref<2x32xf32, #tpu.memory_space<vmem>>, vector<2x32xf32>
      %c0_15 = arith.constant 0 : index
      %c0_16 = arith.constant 0 : index
      %c0_17 = arith.constant 0 : index
      %25 = vector.load %arg5[%c0_15, %c0_16, %c0_17] : memref<1x2x32xf32, #tpu.memory_space<vmem>>, vector<1x2x32xf32>
      %26 = vector.shape_cast %25 : vector<1x2x32xf32> to vector<2x32xf32>
      %27 = vector.shape_cast %24 : vector<2x32xf32> to vector<1x2x32xf32>
      tpu.vector_store %arg5[%c0_15, %c0_16, %c0_17], %27 {strides = array<i32>} : memref<1x2x32xf32, #tpu.memory_space<vmem>>, vector<1x2x32xf32>,
    } else {
    }
    return
  }
  func.func @transform_0(%arg0: i32, %arg1: i32) -> (i32, i32, i32) {
    %c1_i32 = arith.constant 1 : i32
    %0 = arith.muli %arg0, %c1_i32 : i32
    %1 = arith.addi %0, %arg1 : i32
    %c0_i32 = arith.constant 0 : i32
    %c0_i32_0 = arith.constant 0 : i32
    %c0_i32_1 = arith.constant 0 : i32
    return %c0_i32, %1, %c0_i32_0 : i32, i32, i32
  }
  func.func @transform_1(%arg0: i32, %arg1: i32) -> (i32, i32) {
    %c0_i32 = arith.constant 0 : i32
    %c0_i32_0 = arith.constant 0 : i32
    %c0_i32_1 = arith.constant 0 : i32
    return %c0_i32, %c0_i32_0 : i32, i32
  }
  func.func @transform_2(%arg0: i32, %arg1: i32) -> (i32, i32) {
    %c0_i32 = arith.constant 0 : i32
    %c0_i32_0 = arith.constant 0 : i32
    %c0_i32_1 = arith.constant 0 : i32
    return %c0_i32, %c0_i32_0 : i32, i32
  }
  func.func @transform_3(%arg0: i32, %arg1: i32) -> (i32, i32, i32) {
    %c0_i32 = arith.constant 0 : i32
    %c0_i32_0 = arith.constant 0 : i32
    %c0_i32_1 = arith.constant 0 : i32
    return %arg0, %c0_i32, %c0_i32_0 : i32, i32, i32
  }
}

</mosaic_0001>

<llo_original>
// kernel: tpu_custom_call.1
$region0: #{tpu_custom_call.1}
  #allocation0 [shape = 'u32[]', space=smem, size = 0x4, offset = 0x4, fixed_abs, tag = 'smem constant byte address 0x4 - core index']
  #allocation1 [shape = 'u32[144,128]{1,0:T(1,128)}', space=vmem, size = 0x12000, scoped, tag = 'internal scratch']
  #allocation2 [shape = 'f32[2,32]{1,0:T(2,128)}', space=vmem, size = 0x400, scoped, tag = 'scratch operand']
  %s0 = inlined_call_operand.vmem [shape: f32[2,24,8], index: 0, kind: input, shape index: {}]
  %s1 = inlined_call_operand.vmem [shape: f32[8,32], index: 1, kind: input, shape index: {}]
  %s2 = inlined_call_operand.vmem [shape: f32[1,32], index: 2, kind: input, shape index: {}]
  %s3 = inlined_call_operand.hbm [shape: f32[2,2,32], index: 3, kind: output, shape index: {}]
  %s4 = sld [smem:[#allocation0]]
  $region113: #{tpu_custom_call.1} parent=0
    _
  %s6 = ssub.s32 1, %s4
  %s7 = scalar_select 0, %s6, %s4
  $region1: #{tpu_custom_call.1} parent=0
    #allocation3 [shape = 'u8[32768]{0}', space=vmem, size = 0x8000, scoped, tag = 'input window, operand 0']
    #allocation4 [shape = 'u8[2048]{0}', space=vmem, size = 0x800, scoped, tag = 'output window, operand 0']
    #allocation5 [shape = 's32[2]{0}', space=sflag, size = 0x8, scoped, tag = 'scoped memory for tpu_custom_call.1']
    %8 = vsyncpa [#allocation5], 0
    %s9 = scalar_lea.sflag [#allocation5], 1
    %10 = vsyncpa %s9, 0
    loop: start=0, step=1, limit=4
    $region2: #{tpu_custom_call.1} parent=1 // loop_pre_header
      _
    $region3: #{tpu_custom_call.1} parent=1 // loop_header
      %s12 = sphi 0, %s16
      %p13 = scmp.ge.s32.totalorder %s12, 4
      %s19 = sphi 0, %s31
      %s20 = sphi 0, %s27
      %s21 = sphi 0, %s19
      %s22 = sphi 0, %s20
      %s23 = sphi 0, %s21
      %s24 = sphi 0, %s22
      %s36 = sphi 0, %s38
      %s39 = sphi 0, %s36
      %s40 = sphi 0, %s39
      %s56 = sphi 0, %s40
      %s60 = sphi 0, %s60
      %s62 = sphi 0, %s60
      %s63 = sphi 0, %s62
      %s77 = sphi 0, %s63
      %s81 = sphi 0, %s81
      %s83 = sphi 0, %s81
      %s84 = sphi 0, %s83
      %s98 = sphi 0, %s84
      %s104 = sphi 0, %s106
      %s107 = sphi 0, %s104
      %s108 = sphi 0, %s107
      %s124 = sphi 0, %s108
    $region4: #{tpu_custom_call.1} parent=1 // loop_header_branch
      %15 = sbr.rel (%p13) target = $region8
    $region5: #{tpu_custom_call.1} parent=1 // loop_body
      %s17 = ssub.s32 %s12, 1
      %s18 = ssub.s32 %s12, 2
      %s25 = sadd.s32 1, %s20
      %p26 = scmp.ge.s32.totalorder %s25, 1
      %s27 = scalar_select %p26, 0, %s25
      %s28 = sadd.s32 1, %s19
      %s29 = scalar_select %p26, %s28, %s19
      %p30 = scmp.ge.s32.totalorder %s29, 2
      %s31 = scalar_select %p30, 0, %s29
      %s32 = sadd.s32 %s19, %s20
      %s33 = sadd.s32 %s31, %s27
      %s34 = ssub.s32 %s32, %s33
      %p35 = scmp.eq.s32.totalorder %s34, 0
      %s37 = sadd.s32 %s36, 1
      %s38 = scalar_select %p35, %s36, %s37
      %p41 = pneg %p35
      %p42 = scmp.eq.s32.totalorder %s12, 1
      %p43 = por %p41, %p42
      %p44 = scmp.ne.s32.totalorder %s36, %s39
      %p45 = scmp.eq.s32.totalorder %s12, 0
      %p46 = por %p44, %p45
      %p47 = scmp.ne.s32.totalorder %s36, %s39
      %p48 = scmp.eq.s32.totalorder %s17, 1
      %p49 = por %p47, %p48
      %p50 = scmp.ne.s32.totalorder %s39, %s40
      %p51 = scmp.eq.s32.totalorder %s17, 0
      %p52 = por %p50, %p51
      %p53 = scmp.ne.s32.totalorder %s39, %s40
      %p54 = scmp.eq.s32.totalorder %s18, 1
      %p55 = por %p53, %p54
      %p57 = scmp.ne.s32.totalorder %s40, %s56
      %p58 = scmp.eq.s32.totalorder %s18, 0
      %p59 = por %p57, %p58
      %s61 = sadd.s32 %s60, 1
      %p64 = scmp.eq.s32.totalorder %s12, 1
      %p65 = scmp.ne.s32.totalorder %s60, %s62
      %p66 = scmp.eq.s32.totalorder %s12, 0
      %p67 = por %p65, %p66
      %p68 = scmp.ne.s32.totalorder %s60, %s62
      %p69 = scmp.eq.s32.totalorder %s17, 1
      %p70 = por %p68, %p69
      %p71 = scmp.ne.s32.totalorder %s62, %s63
      %p72 = scmp.eq.s32.totalorder %s17, 0
      %p73 = por %p71, %p72
      %p74 = scmp.ne.s32.totalorder %s62, %s63
      %p75 = scmp.eq.s32.totalorder %s18, 1
      %p76 = por %p74, %p75
      %p78 = scmp.ne.s32.totalorder %s63, %s77
      %p79 = scmp.eq.s32.totalorder %s18, 0
      %p80 = por %p78, %p79
      %s82 = sadd.s32 %s81, 1
      %p85 = scmp.eq.s32.totalorder %s12, 1
      %p86 = scmp.ne.s32.totalorder %s81, %s83
      %p87 = scmp.eq.s32.totalorder %s12, 0
      %p88 = por %p86, %p87
      %p89 = scmp.ne.s32.totalorder %s81, %s83
      %p90 = scmp.eq.s32.totalorder %s17, 1
      %p91 = por %p89, %p90
      %p92 = scmp.ne.s32.totalorder %s83, %s84
      %p93 = scmp.eq.s32.totalorder %s17, 0
      %p94 = por %p92, %p93
      %p95 = scmp.ne.s32.totalorder %s83, %s84
      %p96 = scmp.eq.s32.totalorder %s18, 1
      %p97 = por %p95, %p96
      %p99 = scmp.ne.s32.totalorder %s84, %s98
      %p100 = scmp.eq.s32.totalorder %s18, 0
      %p101 = por %p99, %p100
      %s102 = ssub.s32 %s19, %s31
      %p103 = scmp.eq.s32.totalorder %s102, 0
      %s105 = sadd.s32 %s104, 1
      %s106 = scalar_select %p103, %s104, %s105
      %p109 = pneg %p103
      %p110 = scmp.eq.s32.totalorder %s12, 1
      %p111 = por %p109, %p110
      %p112 = scmp.ne.s32.totalorder %s104, %s107
      %p113 = scmp.eq.s32.totalorder %s12, 0
      %p114 = por %p112, %p113
      %p115 = scmp.ne.s32.totalorder %s104, %s107
      %p116 = scmp.eq.s32.totalorder %s17, 1
      %p117 = por %p115, %p116
      %p118 = scmp.ne.s32.totalorder %s107, %s108
      %p119 = scmp.eq.s32.totalorder %s17, 0
      %p120 = por %p118, %p119
      %p121 = scmp.ne.s32.totalorder %s107, %s108
      %p122 = scmp.eq.s32.totalorder %s18, 1
      %p123 = por %p121, %p122
      %p125 = scmp.ne.s32.totalorder %s108, %s124
      %p126 = scmp.eq.s32.totalorder %s18, 0
      %p127 = por %p125, %p126
      %p128 = scmp.le.s32.totalorder 1, %s12
      %p129 = scmp.lt.s32.totalorder %s12, 3
      %p130 = pnand %p128, %p129
      %p131 = pneg %p130
      // Predicated region
      $region9: #{tpu_custom_call.1} parent=5 // pred_check
        _
      $region10: #{tpu_custom_call.1} parent=5 // pred_check_branch
        %133 = sbr.rel (%p130) target = $region12
      $region11: #{tpu_custom_call.1} parent=5 // pred_region
        %s134 = ssub.s32 %s12, 1
        // Predicated region
        $region13: #{tpu_custom_call.1} parent=11 // pred_check
          %p135 = pneg %p73
        $region14: #{tpu_custom_call.1} parent=11 // pred_check_branch
          %137 = sbr.rel (%p135) target = $region16
        $region15: #{tpu_custom_call.1} parent=11 // pred_region
          _
        $region16: #{tpu_custom_call.1} parent=11 // pred_fallthru
          _
        // Predicated region
        $region17: #{tpu_custom_call.1} parent=11 // pred_check
          %p138 = pneg %p94
        $region18: #{tpu_custom_call.1} parent=11 // pred_check_branch
          %140 = sbr.rel (%p138) target = $region20
        $region19: #{tpu_custom_call.1} parent=11 // pred_region
          _
        $region20: #{tpu_custom_call.1} parent=11 // pred_fallthru
          _
      $region12: #{tpu_custom_call.1} parent=5 // pred_fallthru
        _
      %p141 = scmp.lt.s32.totalorder %s12, 2
      // Predicated region
      $region21: #{tpu_custom_call.1} parent=5 // pred_check
        %p142 = pneg %p141
      $region22: #{tpu_custom_call.1} parent=5 // pred_check_branch
        %144 = sbr.rel (%p142) target = $region24
      $region23: #{tpu_custom_call.1} parent=5 // pred_region
        // Predicated region
        $region25: #{tpu_custom_call.1} parent=23 // pred_check
          %p145 = pneg %p46
        $region26: #{tpu_custom_call.1} parent=23 // pred_check_branch
          %147 = sbr.rel (%p145) target = $region28
        $region27: #{tpu_custom_call.1} parent=23 // pred_region
          %s148 = sand.u32 %s36, 1
          %s149 = sand.u32 %s36, 1
          %s150 = smul.addr %s149, 32
          %s151 = scalar_lea.vmem [#allocation3], %s150
          %s152 = sadd.s32 %s19, %s20
          %s153 = smul.u32 2, %s152
          %s154 = ssub.s32 3, %s153
          %p155 = scmp.lt.s32.totalorder %s154, 2
          %s156 = scalar_select %p155, %s154, 2
          %s157 = smul.u32 256, %s156
          %p158 = scmp.ne.s32.totalorder 0, %s157
          %s159 = smul.addr %s153, 8
          %s160 = scalar_lea.vmem %s0, %s159
          // Predicated region
          $region29: #{tpu_custom_call.1} parent=27 // pred_check
            %p161 = pneg %p158
          $region30: #{tpu_custom_call.1} parent=27 // pred_check_branch
            %163 = sbr.rel (%p161) target = $region32
          $region31: #{tpu_custom_call.1} parent=27 // pred_region
            // Predicated region
            $region33: #{tpu_custom_call.1} parent=31 // pred_check
              _
            $region34: #{tpu_custom_call.1} parent=31 // pred_check_branch
              %165 = sbr.rel (0) target = $region36
            $region35: #{tpu_custom_call.1} parent=31 // pred_region
              // Predicated region
              $region55: #{tpu_custom_call.1} parent=35 // pred_check
                _
              $region56: #{tpu_custom_call.1} parent=35 // pred_check_branch
                %223 = sbr.rel (0) target = $region58
              $region57: #{tpu_custom_call.1} parent=35 // pred_region
                %s224 = sshrl.u32 %s156, 1
                // While loop
                $region59: #{tpu_custom_call.1} parent=57 // loop_pre_header
                  _
                $region60: #{tpu_custom_call.1} parent=57 // loop_header
                  %s226 = sphi 0, %s228
                  %p227 = scmp.ge.s32.totalorder %s226, %s224
                  %s231 = sphi 0, %s244
                  %s232 = sphi %s160, %s247
                  %s233 = sphi %s151, %s248
                $region61: #{tpu_custom_call.1} parent=57 // loop_header_branch
                  %230 = sbr.rel (%p227) target = $region65
                $region62: #{tpu_custom_call.1} parent=57 // loop_body
                  %v234 = vld [vmem:[%s232] sm:$0xff]
                  %235 = vst [vmem:[%s233] sm:$0xff] %v234
                  %v236 = vld [vmem:[%s232 + $0x8] sm:$0xff]
                  %237 = vst [vmem:[%s233 + $0x8] sm:$0xff] %v236
                  %v238 = vld [vmem:[%s232 + $0x18] sm:$0xff]
                  %239 = vst [vmem:[%s233 + $0x10] sm:$0xff] %v238
                  %v240 = vld [vmem:[%s232 + $0x20] sm:$0xff]
                  %241 = vst [vmem:[%s233 + $0x18] sm:$0xff] %v240
                  %s242 = sadd.s32 1, %s231
                  %p243 = scmp.ge.s32.totalorder %s242, %s224
                  %s244 = scalar_select %p243, 0, %s242
                  %s245 = smul.u32 %s244, 16
                  %s246 = smul.u32 %s244, 16
                  %s247 = scalar_lea.vmem %s160, %s245
                  %s248 = scalar_lea.vmem %s151, %s246 [#allocation3]
                $region63: #{tpu_custom_call.1} parent=57 // loop_footer
                  %s228 = sadd.s32 %s226, 1
                $region64: #{tpu_custom_call.1} parent=57 // loop_footer_branch
                  %225 = sbr.rel target = $region60
                $region65: #{tpu_custom_call.1} parent=57 // loop_exit
                  _
                %s249 = sshrl.u32 %s156, 1
                %s250 = sand.u32 %s156, 1
                %s251 = smul.u32 %s249, 2
                %s252 = smul.u32 8, %s251
                %s253 = scalar_lea.vmem %s160, %s252
                %s254 = smul.u32 8, %s251
                %s255 = scalar_lea.vmem %s151, %s254 [#allocation3]
                // While loop
                $region66: #{tpu_custom_call.1} parent=57 // loop_pre_header
                  _
                $region67: #{tpu_custom_call.1} parent=57 // loop_header
                  %s257 = sphi 0, %s259
                  %p258 = scmp.ge.s32.totalorder %s257, %s250
                  %s262 = sphi 0, %s271
                  %s263 = sphi %s253, %s274
                  %s264 = sphi %s255, %s275
                $region68: #{tpu_custom_call.1} parent=57 // loop_header_branch
                  %261 = sbr.rel (%p258) target = $region72
                $region69: #{tpu_custom_call.1} parent=57 // loop_body
                  %v265 = vld [vmem:[%s263] sm:$0xff]
                  %266 = vst [vmem:[%s264] sm:$0xff] %v265
                  %v267 = vld [vmem:[%s263 + $0x18] sm:$0xff]
                  %268 = vst [vmem:[%s264 + $0x10] sm:$0xff] %v267
                  %s269 = sadd.s32 1, %s262
                  %p270 = scmp.ge.s32.totalorder %s269, %s250
                  %s271 = scalar_select %p270, 0, %s269
                  %s272 = smul.u32 %s271, 8
                  %s273 = smul.u32 %s271, 8
                  %s274 = scalar_lea.vmem %s253, %s272
                  %s275 = scalar_lea.vmem %s255, %s273 [#allocation3]
                $region70: #{tpu_custom_call.1} parent=57 // loop_footer
                  %s259 = sadd.s32 %s257, 1
                $region71: #{tpu_custom_call.1} parent=57 // loop_footer_branch
                  %256 = sbr.rel target = $region67
                $region72: #{tpu_custom_call.1} parent=57 // loop_exit
                  _
              $region58: #{tpu_custom_call.1} parent=35 // pred_fallthru
                _
              // Predicated region
              $region73: #{tpu_custom_call.1} parent=35 // pred_check
                _
              $region74: #{tpu_custom_call.1} parent=35 // pred_check_branch
                %277 = sbr.rel target = $region76
              $region75: #{tpu_custom_call.1} parent=35 // pred_region
                _
              $region76: #{tpu_custom_call.1} parent=35 // pred_fallthru
                _
            $region36: #{tpu_custom_call.1} parent=31 // pred_fallthru
              _
            // Predicated region
            $region37: #{tpu_custom_call.1} parent=31 // pred_check
              _
            $region38: #{tpu_custom_call.1} parent=31 // pred_check_branch
              %167 = sbr.rel target = $region40
            $region39: #{tpu_custom_call.1} parent=31 // pred_region
              %s169 = ssub.s32 256, 1
              %s170 = sshrl.u32 %s156, 1
              // While loop
              $region41: #{tpu_custom_call.1} parent=39 // loop_pre_header
                _
              $region42: #{tpu_custom_call.1} parent=39 // loop_header
                %s172 = sphi 0, %s174
                %p173 = scmp.ge.s32.totalorder %s172, %s170
                %s177 = sphi 0, %s190
                %s178 = sphi %s160, %s193
                %s179 = sphi %s151, %s194
              $region43: #{tpu_custom_call.1} parent=39 // loop_header_branch
                %176 = sbr.rel (%p173) target = $region47
              $region44: #{tpu_custom_call.1} parent=39 // loop_body
                %v180 = vld [vmem:[%s178] sm:%s169]
                %181 = vst [vmem:[%s179] sm:%s169] %v180
                %v182 = vld [vmem:[%s178 + $0x8] sm:%s169]
                %183 = vst [vmem:[%s179 + $0x8] sm:%s169] %v182
                %v184 = vld [vmem:[%s178 + $0x18] sm:%s169]
                %185 = vst [vmem:[%s179 + $0x10] sm:%s169] %v184
                %v186 = vld [vmem:[%s178 + $0x20] sm:%s169]
                %187 = vst [vmem:[%s179 + $0x18] sm:%s169] %v186
                %s188 = sadd.s32 1, %s177
                %p189 = scmp.ge.s32.totalorder %s188, %s170
                %s190 = scalar_select %p189, 0, %s188
                %s191 = smul.u32 %s190, 16
                %s192 = smul.u32 %s190, 16
                %s193 = scalar_lea.vmem %s160, %s191
                %s194 = scalar_lea.vmem %s151, %s192 [#allocation3]
              $region45: #{tpu_custom_call.1} parent=39 // loop_footer
                %s174 = sadd.s32 %s172, 1
              $region46: #{tpu_custom_call.1} parent=39 // loop_footer_branch
                %171 = sbr.rel target = $region42
              $region47: #{tpu_custom_call.1} parent=39 // loop_exit
                _
              %s195 = sshrl.u32 %s156, 1
              %s196 = sand.u32 %s156, 1
              %s197 = smul.u32 %s195, 2
              %s198 = smul.u32 8, %s197
              %s199 = scalar_lea.vmem %s160, %s198
              %s200 = smul.u32 8, %s197
              %s201 = scalar_lea.vmem %s151, %s200 [#allocation3]
              // While loop
              $region48: #{tpu_custom_call.1} parent=39 // loop_pre_header
                _
              $region49: #{tpu_custom_call.1} parent=39 // loop_header
                %s203 = sphi 0, %s205
                %p204 = scmp.ge.s32.totalorder %s203, %s196
                %s208 = sphi 0, %s217
                %s209 = sphi %s199, %s220
                %s210 = sphi %s201, %s221
              $region50: #{tpu_custom_call.1} parent=39 // loop_header_branch
                %207 = sbr.rel (%p204) target = $region54
              $region51: #{tpu_custom_call.1} parent=39 // loop_body
                %v211 = vld [vmem:[%s209] sm:%s169]
                %212 = vst [vmem:[%s210] sm:%s169] %v211
                %v213 = vld [vmem:[%s209 + $0x18] sm:%s169]
                %214 = vst [vmem:[%s210 + $0x10] sm:%s169] %v213
                %s215 = sadd.s32 1, %s208
                %p216 = scmp.ge.s32.totalorder %s215, %s196
                %s217 = scalar_select %p216, 0, %s215
                %s218 = smul.u32 %s217, 8
                %s219 = smul.u32 %s217, 8
                %s220 = scalar_lea.vmem %s199, %s218
                %s221 = scalar_lea.vmem %s201, %s219 [#allocation3]
              $region52: #{tpu_custom_call.1} parent=39 // loop_footer
                %s205 = sadd.s32 %s203, 1
              $region53: #{tpu_custom_call.1} parent=39 // loop_footer_branch
                %202 = sbr.rel target = $region49
              $region54: #{tpu_custom_call.1} parent=39 // loop_exit
                _
            $region40: #{tpu_custom_call.1} parent=31 // pred_fallthru
              _
          $region32: #{tpu_custom_call.1} parent=27 // pred_fallthru
            _
          %278 = vnop
        $region28: #{tpu_custom_call.1} parent=23 // pred_fallthru
          _
      $region24: #{tpu_custom_call.1} parent=5 // pred_fallthru
        _
      %p279 = scmp.le.s32.totalorder 1, %s12
      %p280 = scmp.lt.s32.totalorder %s12, 3
      %p281 = pnand %p279, %p280
      %p282 = pneg %p281
      // Predicated region
      $region77: #{tpu_custom_call.1} parent=5 // pred_check
        _
      $region78: #{tpu_custom_call.1} parent=5 // pred_check_branch
        %284 = sbr.rel (%p281) target = $region80
      $region79: #{tpu_custom_call.1} parent=5 // pred_region
        %s285 = ssub.s32 %s12, 1
        %s286 = sand.u32 %s39, 1
        %s287 = sand.u32 %s39, 1
        %s288 = smul.addr %s287, 32
        %s289 = scalar_lea.vmem [#allocation3], %s288
        // Predicated region
        $region81: #{tpu_custom_call.1} parent=79 // pred_check
          %p290 = pneg %p52
        $region82: #{tpu_custom_call.1} parent=79 // pred_check_branch
          %292 = sbr.rel (%p290) target = $region84
        $region83: #{tpu_custom_call.1} parent=79 // pred_region
          _
        $region84: #{tpu_custom_call.1} parent=79 // pred_fallthru
          _
        %s293 = sand.u32 %s39, 1
        %s294 = sand.u32 %s39, 1
        %s295 = smul.addr %s294, 32
        %s296 = scalar_lea.vmem [#allocation3], %s295
        %p297 = pneg %p52
        %p298 = pneg %p49
        %p299 = pneg %p73
        %p300 = pneg %p70
        %p301 = pneg %p94
        %p302 = pneg %p91
        %p303 = pneg %p120
        %p304 = pneg %p117
        %s305 = sand.u32 %s107, 1
        %s306 = scalar_lea.sflag [#allocation5], %s305
        %s307 = sand.u32 %s107, 1
        %s308 = smul.addr %s307, 2
        %s309 = scalar_lea.vmem [#allocation4], %s308
        %s310 = sadd.s32 %s21, %s22
        %s311 = smul.u32 2, %s310
        %s312 = ssub.s32 3, %s311
        %p313 = scmp.lt.s32.totalorder %s312, 2
        %s314 = scalar_select %p313, %s312, 2
        %s315 = smul.u32 256, %s314
        %p316 = scmp.eq.s32.totalorder %s22, 0
        // Predicated region
        $region85: #{tpu_custom_call.1} parent=79 // pred_check
          %p317 = pneg %p316
        $region86: #{tpu_custom_call.1} parent=79 // pred_check_branch
          %319 = sbr.rel (%p317) target = $region88
        $region87: #{tpu_custom_call.1} parent=79 // pred_region
          %vm320 = vcmask 254976
          %321 = vst.msk [vmem:[#allocation2] sm:$0x3] %vm320, 0.0
        $region88: #{tpu_custom_call.1} parent=79 // pred_fallthru
          _
        %v322 = vld [vmem:[%s289] sm:$0xff]
        %v323 = vld [vmem:[%s289 + $0x8] sm:$0xff]
        %v324 = vld [vmem:[%s289 + $0x10] sm:$0xff]
        %v325 = vld [vmem:[%s289 + $0x18] sm:$0xff]
        %v326 = vld [vmem:[%s1] sm:$0xff]
        %v327 = vld [vmem:[%s2] sm:$0x1]
        %v329 = vlaneseq
        %v330 = vshrl.u32 %v329, 7
        %v331 = vsub.s32 0, %v330
        %v332 = vrot.slane %v327, %v331
        %vm334 = vcmask 64512
        %v336 = vsel %vm334, %v322, 0
        %v339 = vsel %vm334, %v323, 0
        %v342 = vsel %vm334, %v324, 0
        %v345 = vsel %vm334, %v325, 0
        %347 = vmatprep.subr.mxu0 0.0
        %348 = vmatpush1.msra.mxu0 0.0
        %349 = vmatprep.subr.mxu0 0.0
        %350 = vmatpush1.msra.mxu0 0.0
        %351 = vmatprep.subr.mxu0 0.0
        %352 = vmatpush1.msra.mxu0 0.0
        %353 = vmatprep.subr.mxu0 0.0
        %354 = vmatpush1.msra.mxu0 0.0
        %355 = vmatprep.subr.mxu0 0.0
        %356 = vmatpush1.msra.mxu0 0.0
        %357 = vmatprep.subr.mxu0 0.0
        %358 = vmatpush1.msra.mxu0 0.0
        %359 = vmatprep.subr.mxu0 0.0
        %360 = vmatpush1.msra.mxu0 0.0
        %361 = vmatprep.subr.mxu0 0.0
        %362 = vmatpush1.msra.mxu0 0.0
        %363 = vmatprep.subr.mxu0 0.0
        %364 = vmatpush1.msra.mxu0 0.0
        %365 = vmatprep.subr.mxu0 0.0
        %366 = vmatpush1.msra.mxu0 0.0
        %367 = vmatprep.subr.mxu0 0.0
        %368 = vmatpush1.msra.mxu0 0.0
        %369 = vmatprep.subr.mxu0 0.0
        %370 = vmatpush1.msra.mxu0 0.0
        %371 = vmatprep.subr.mxu0 0.0
        %372 = vmatpush1.msra.mxu0 0.0
        %373 = vmatprep.subr.mxu0 0.0
        %374 = vmatpush1.msra.mxu0 0.0
        %375 = vmatprep.subr.mxu0 0.0
        %376 = vmatpush1.msra.mxu0 0.0
        %377 = vmatprep.subr.mxu0 0.0
        %378 = vmatpush1.msra.mxu0 %v326
        %379 = vmatprep.subr.mxu0 0.0
        %380 = vmatpush2.msra.mxu0 0.0
        %381 = vmatprep.subr.mxu0 0.0
        %382 = vmatpush2.msra.mxu0 0.0
        %383 = vmatprep.subr.mxu0 0.0
        %384 = vmatpush2.msra.mxu0 0.0
        %385 = vmatprep.subr.mxu0 0.0
        %386 = vmatpush2.msra.mxu0 0.0
        %387 = vmatprep.subr.mxu0 0.0
        %388 = vmatpush2.msra.mxu0 0.0
        %389 = vmatprep.subr.mxu0 0.0
        %390 = vmatpush2.msra.mxu0 0.0
        %391 = vmatprep.subr.mxu0 0.0
        %392 = vmatpush2.msra.mxu0 0.0
        %393 = vmatprep.subr.mxu0 0.0
        %394 = vmatpush2.msra.mxu0 0.0
        %395 = vmatprep.subr.mxu0 0.0
        %396 = vmatpush2.msra.mxu0 0.0
        %397 = vmatprep.subr.mxu0 0.0
        %398 = vmatpush2.msra.mxu0 0.0
        %399 = vmatprep.subr.mxu0 0.0
        %400 = vmatpush2.msra.mxu0 0.0
        %401 = vmatprep.subr.mxu0 0.0
        %402 = vmatpush2.msra.mxu0 0.0
        %403 = vmatprep.subr.mxu0 0.0
        %404 = vmatpush2.msra.mxu0 0.0
        %405 = vmatprep.subr.mxu0 0.0
        %406 = vmatpush2.msra.mxu0 0.0
        %407 = vmatprep.subr.mxu0 0.0
        %408 = vmatpush2.msra.mxu0 0.0
        %409 = vmatprep.subr.mxu0 0.0
        %410 = vmatpush2.msra.mxu0 0.0
        %411 = vmatprep.mubr.f32.mxu0 0.0
        %412 = vmatmul.mubr.f32.gmra.mxu0 %v336
        %v413 = vpop.f32.mrf.mxu0
        %v414 = vadd.f32 %v332, %v413
        %v415 = vpop.f32.mrf.mxu0
        %416 = vmatprep.mubr.f32.mxu0 0.0
        %417 = vmatmul.mubr.f32.gmra.mxu0 %v339
        %v418 = vpop.f32.mrf.mxu0
        %v419 = vadd.f32 %v332, %v418
        %v420 = vpop.f32.mrf.mxu0
        %421 = vmatprep.mubr.f32.mxu0 0.0
        %422 = vmatmul.mubr.f32.gmra.mxu0 %v342
        %v423 = vpop.f32.mrf.mxu0
        %v424 = vadd.f32 %v332, %v423
        %v425 = vpop.f32.mrf.mxu0
        %426 = vmatprep.mubr.f32.mxu0 0.0
        %427 = vmatmul.mubr.f32.gmra.mxu0 %v345
        %v428 = vpop.f32.mrf.mxu0
        %v429 = vadd.f32 %v332, %v428
        %v430 = vpop.f32.mrf.mxu0
        %431 = vdwg.mxu0
        %v432 = vmax.f32 %v414, 0.0
        %v433 = vmax.f32 %v419, 0.0
        %v434 = vmax.f32 %v424, 0.0
        %v435 = vmax.f32 %v429, 0.0
        %p436 = scmp.eq.s32.totalorder %s21, 1
        %p437 = pnand %p436, %p316
        %p438 = pneg %p437
        // Predicated region
        $region89: #{tpu_custom_call.1} parent=79 // pred_check
          _
        $region90: #{tpu_custom_call.1} parent=79 // pred_check_branch
          %440 = sbr.rel (%p437) target = $region92
        $region91: #{tpu_custom_call.1} parent=79 // pred_region
          %v441 = vlaneseq
          %v442 = vshrl.u32 %v441, 7
          %v443 = vadd.s32 %v442, 8
          %v444 = vld [vmem:[#allocation2] sm:$0x3]
          %vm445 = vcmp.lt.s32.totalorder %v442, 8
          %vm446 = vcmp.lt.s32.totalorder %v443, 8
          %v447 = vsel %vm445, 1, 0
          %v448 = vsel %vm446, 1, 0
          %vm449 = vcmp.eq.s32.totalorder %v447, 1
          %vm450 = vcmp.eq.s32.totalorder %v448, 1
          %v451 = vsel %vm449, %v432, 0.0
          %v452 = vsel %vm450, %v433, 0.0
          %v453 = vsel %vm449, %v434, 0.0
          %v454 = vsel %vm450, %v435, 0.0
          %vm455 = vcmask 261120
          %v456 = vsel %vm455, %v451, 0.0
          %v457 = vsel %vm455, %v452, 0.0
          %v458 = vadd.f32 %v456, %v457
          %v459 = vrot.slane %v458, 4
          %v460 = vadd.f32 %v458, %v459
          %v461 = vrot.slane %v460, 2
          %v462 = vadd.f32 %v460, %v461
          %v463 = vrot.slane %v462, 1
          %v464 = vadd.f32 %v462, %v463
          %v465 = vsel %vm455, %v453, 0.0
          %v466 = vsel %vm455, %v454, 0.0
          %v467 = vadd.f32 %v465, %v466
          %v468 = vrot.slane %v467, 4
          %v469 = vadd.f32 %v467, %v468
          %v470 = vrot.slane %v469, 2
          %v471 = vadd.f32 %v469, %v470
          %v472 = vrot.slane %v471, 1
          %v473 = vadd.f32 %v471, %v472
          %vm476 = vcmask 1041409
          %v477 = vsel %vm476, %v473, %v464
          %v479 = vadd.f32 %v444, %v477
          %vm480 = vcmask 254976
          %481 = vst.msk [vmem:[#allocation2] sm:$0x3] %vm480, %v479
        $region92: #{tpu_custom_call.1} parent=79 // pred_fallthru
          _
        // Predicated region
        $region93: #{tpu_custom_call.1} parent=79 // pred_check
          %p482 = pneg %p437
        $region94: #{tpu_custom_call.1} parent=79 // pred_check_branch
          %484 = sbr.rel (%p482) target = $region96
        $region95: #{tpu_custom_call.1} parent=79 // pred_region
          %v485 = vld [vmem:[#allocation2] sm:$0x3]
          %vm486 = vcmask 261120
          %v487 = vsel %vm486, %v432, 0.0
          %v488 = vsel %vm486, %v433, 0.0
          %v489 = vadd.f32 %v487, %v488
          %v490 = vrot.slane %v489, 4
          %v491 = vadd.f32 %v489, %v490
          %v492 = vrot.slane %v491, 2
          %v493 = vadd.f32 %v491, %v492
          %v494 = vrot.slane %v493, 1
          %v495 = vadd.f32 %v493, %v494
          %v496 = vsel %vm486, %v434, 0.0
          %v497 = vsel %vm486, %v435, 0.0
          %v498 = vadd.f32 %v496, %v497
          %v499 = vrot.slane %v498, 4
          %v500 = vadd.f32 %v498, %v499
          %v501 = vrot.slane %v500, 2
          %v502 = vadd.f32 %v500, %v501
          %v503 = vrot.slane %v502, 1
          %v504 = vadd.f32 %v502, %v503
          %vm507 = vcmask 1041409
          %v508 = vsel %vm507, %v504, %v495
          %v510 = vadd.f32 %v485, %v508
          %vm511 = vcmask 254976
          %512 = vst.msk [vmem:[#allocation2] sm:$0x3] %vm511, %v510
        $region96: #{tpu_custom_call.1} parent=79 // pred_fallthru
          _
        // Predicated region
        $region97: #{tpu_custom_call.1} parent=79 // pred_check
          %p513 = pneg %p316
        $region98: #{tpu_custom_call.1} parent=79 // pred_check_branch
          %515 = sbr.rel (%p513) target = $region100
        $region99: #{tpu_custom_call.1} parent=79 // pred_region
          %v516 = vld [vmem:[#allocation2] sm:$0x3]
          %vm517 = vcmask 254976
          %518 = vst.msk [vmem:[%s309] sm:$0x3] %vm517, %v516
        $region100: #{tpu_custom_call.1} parent=79 // pred_fallthru
          _
        %s519 = sand.u32 %s107, 1
        %s520 = scalar_lea.sflag [#allocation5], %s519
        %s521 = sand.u32 %s107, 1
        %s522 = smul.addr %s521, 2
        %s523 = scalar_lea.vmem [#allocation4], %s522
        // Predicated region
        $region101: #{tpu_custom_call.1} parent=79 // pred_check
          %p524 = pneg %p117
        $region102: #{tpu_custom_call.1} parent=79 // pred_check_branch
          %526 = sbr.rel (%p524) target = $region104
        $region103: #{tpu_custom_call.1} parent=79 // pred_region
          %s528 = ssub.s32 32, 32
          %529 = vsyncadd %s520, %s528
          %s530 = smul.addr %s21, 32
          %s531 = scalar_lea.hbm %s3, %s530
          %s533 = sshll.u32 %s523, 4
          %s534 = int_to_ptr.vmem [resolvable:$true] %s533
          %536 = dma.vmem_to_hbm [thread:$0]  %s534, 32, %s531, %s520
        $region104: #{tpu_custom_call.1} parent=79 // pred_fallthru
          _
      $region80: #{tpu_custom_call.1} parent=5 // pred_fallthru
        _
      %p537 = scmp.le.s32.totalorder 2, %s12
      // Predicated region
      $region105: #{tpu_custom_call.1} parent=5 // pred_check
        %p538 = pneg %p537
      $region106: #{tpu_custom_call.1} parent=5 // pred_check_branch
        %540 = sbr.rel (%p538) target = $region108
      $region107: #{tpu_custom_call.1} parent=5 // pred_region
        %s541 = ssub.s32 %s12, 2
        // Predicated region
        $region109: #{tpu_custom_call.1} parent=107 // pred_check
          %p542 = pneg %p123
        $region110: #{tpu_custom_call.1} parent=107 // pred_check_branch
          %544 = sbr.rel (%p542) target = $region112
        $region111: #{tpu_custom_call.1} parent=107 // pred_region
          %s545 = sand.u32 %s108, 1
          %s546 = scalar_lea.sflag [#allocation5], %s545
          %s547 = sand.u32 %s108, 1
          %s548 = smul.addr %s547, 2
          %s549 = scalar_lea.vmem [#allocation4], %s548
          %550 = dma.done %s546, 32
        $region112: #{tpu_custom_call.1} parent=107 // pred_fallthru
          _
      $region108: #{tpu_custom_call.1} parent=5 // pred_fallthru
        _
    $region6: #{tpu_custom_call.1} parent=1 // loop_footer
      %s16 = sadd.s32 1, %s12
    $region7: #{tpu_custom_call.1} parent=1 // loop_footer_branch
      %11 = sbr.rel target = $region3
    $region8: #{tpu_custom_call.1} parent=1 // loop_exit
      _
    %551 = vsyncpa [#allocation5], 1
    %s552 = scalar_lea.sflag [#allocation5], 1
    %553 = vsyncpa %s552, 1

</llo_original>
